<compile_context>
chip_gen: v7x
topology: tpu7x:2x2x1
jax: 0.10.0
libtpu: 0.0.40
codegen_flags: <defaults>
</compile_context>

<pallas_src>
import functools

import jax
import jax.numpy as jnp
from jax import lax
from jax.experimental import pallas as pl
from jax.experimental.pallas import tpu as pltpu

# Sublane-friendly padded hidden dims (zero-filled; mathematically exact).
_H0, _H1, _H2 = 128, 160, 64


def _use_bf16_activations():
    """bf16 activation math on chips with a bf16 VPU/EUP (v6e/v7x); f32 on v5e."""
    try:
        kind = jax.devices()[0].device_kind.lower()
    except Exception:
        kind = ""
    return not ("v5 lite" in kind or "v5e" in kind)


def _mlp_kernel(x_ref,
                w0_ref, b0_ref,
                w1_ref, b1_ref,
                w2_ref, b2_ref,
                w3_ref, b3_ref,
                o_ref, *, bf16_act):
    # x_ref: (TB, F) f32 tile in the input's natural (B, F) layout.
    xt = x_ref[...].astype(jnp.bfloat16)

    # Layer 1: Linear(F, 100) + tanh.  Contract over F directly from the
    # (TB, F) layout -> (H0, TB): batch lands on the lane axis with no
    # transpose of x anywhere (wrapper or kernel).
    z = lax.dot_general(w0_ref[...], xt, (((1,), (1,)), ((), ())),
                        preferred_element_type=jnp.float32) + b0_ref[...]
    if bf16_act:
        a = jnp.tanh(z.astype(jnp.bfloat16))          # bf16 EUP path (v6e/v7x)
    else:
        a = jnp.tanh(z).astype(jnp.bfloat16)          # f32 path (v5e)

    # Layer 2: Linear(100, 150) + relu  (dropout = identity at inference).
    z = jnp.dot(w1_ref[...], a, preferred_element_type=jnp.float32) + b1_ref[...]
    a = (jnp.maximum(z.astype(jnp.bfloat16), 0.0) if bf16_act
         else jnp.maximum(z, 0.0).astype(jnp.bfloat16))

    # Layer 3: Linear(150, 50) + relu  (dropout = identity at inference).
    z = jnp.dot(w2_ref[...], a, preferred_element_type=jnp.float32) + b2_ref[...]
    a = (jnp.maximum(z.astype(jnp.bfloat16), 0.0) if bf16_act
         else jnp.maximum(z, 0.0).astype(jnp.bfloat16))

    # Output: Linear(50, 1) + sigmoid -> (1, TB) f32, lane-dense store.
    z = jnp.dot(w3_ref[...], a, preferred_element_type=jnp.float32) + b3_ref[...]
    o_ref[...] = jax.nn.sigmoid(z)


def _prepare_params(params):
    """One-time param prep (amortize across calls in real use): cast weights to
    bf16 and zero-pad hidden dims to sublane-friendly sizes.  Biases stay f32."""
    def pad2(a, r, c):
        return jnp.pad(a, ((0, r - a.shape[0]), (0, c - a.shape[1])))
    F = params["w0"].shape[1]
    w0 = pad2(params["w0"], _H0, F).astype(jnp.bfloat16)
    w1 = pad2(params["w1"], _H1, _H0).astype(jnp.bfloat16)
    w2 = pad2(params["w2"], _H2, _H1).astype(jnp.bfloat16)
    w3 = pad2(params["w3"], 1, _H2).astype(jnp.bfloat16)
    b0 = pad2(params["b0"], _H0, 1)
    b1 = pad2(params["b1"], _H1, 1)
    b2 = pad2(params["b2"], _H2, 1)
    b3 = params["b3"]
    return (w0, b0, w1, b1, w2, b2, w3, b3)


def restaurants_dnn_forward(x, params, *, block_b=None, bf16_activations=None):
    """x: (B, F) f32 (natural layout; never transposed / padded / cast in HBM).
    params: w{i} as (out, in), b{i} as (out, 1), all f32.

    block_b: batch tile = lane width of every activation block; multiple of 128.
    Auto choice caps at 2048 (per-tile VMEM ~3 MiB: safe on v5e's 16 MiB scoped
    default and v7x's 64 MiB VMEM, and keeps >= 2 tiles for v7x megacore once
    B >= 4096).  Sweep 2048-8192 on v5e/v6e for very large B if desired.
    """
    B, F = x.shape
    if bf16_activations is None:
        bf16_activations = _use_bf16_activations()
    if block_b is None:
        block_b = min(2048, max(128, 128 * (B // 128)))
    assert block_b % 128 == 0

    n_tiles = pl.cdiv(B, block_b)
    prepped = _prepare_params(params)

    const = lambda i: (0, 0)   # weights/biases: single block, fetched once, VMEM-resident
    in_specs = [pl.BlockSpec((block_b, F), lambda i: (i, 0))]
    for a in prepped:
        in_specs.append(pl.BlockSpec(a.shape, const))

    out = pl.pallas_call(
        functools.partial(_mlp_kernel, bf16_act=bf16_activations),
        out_shape=jax.ShapeDtypeStruct((1, B), jnp.float32),
        grid=(n_tiles,),
        in_specs=in_specs,
        out_specs=pl.BlockSpec((1, block_b), lambda i: (0, i)),
        compiler_params=pltpu.CompilerParams(
            dimension_semantics=("parallel",),   # v7x: shard batch tiles across both TCs
        ),
    )(x, *prepped)

    return out.reshape(B, 1)


def init_params(key, input_neurons):
    """Deterministic init matching nn.Linear shapes: W (out, in), b (out, 1)."""
    dims = [(100, input_neurons), (150, 100), (50, 150), (1, 50)]
    params = {}
    for i, (fan_out, fan_in) in enumerate(dims):
        key, kw, kb = jax.random.split(key, 3)
        bound = 1.0 / (fan_in ** 0.5)
        params[f"w{i}"] = jax.random.uniform(
            kw, (fan_out, fan_in), jnp.float32, -bound, bound)
        params[f"b{i}"] = jax.random.uniform(
            kb, (fan_out, 1), jnp.float32, -bound, bound)
    return params


def _reference_forward(x, params, *, bf16_activations):
    """Pure-JAX reference with the same bf16-operand / f32-accumulate math and
    the same activation precision as the kernel, on the unpadded weights."""
    wb = lambda k: params[k].astype(jnp.bfloat16)
    if bf16_activations:
        act = lambda z, f: f(z.astype(jnp.bfloat16))
    else:
        act = lambda z, f: f(z).astype(jnp.bfloat16)
    relu = lambda v: jnp.maximum(v, 0.0)

    xt = x.astype(jnp.bfloat16).T                         # (F, B)
    z = jnp.dot(wb("w0"), xt, preferred_element_type=jnp.float32) + params["b0"]
    a = act(z, jnp.tanh)
    z = jnp.dot(wb("w1"), a, preferred_element_type=jnp.float32) + params["b1"]
    a = act(z, relu)
    z = jnp.dot(wb("w2"), a, preferred_element_type=jnp.float32) + params["b2"]
    a = act(z, relu)
    z = jnp.dot(wb("w3"), a, preferred_element_type=jnp.float32) + params["b3"]
    return jax.nn.sigmoid(z).T                            # (B, 1)


if __name__ == "__main__":
    key = jax.random.PRNGKey(0)
    input_neurons = 32
    batch = 300        # not a multiple of 128 -> exercises the ragged-last-tile path

    kx, kp = jax.random.split(key)
    x = jax.random.normal(kx, (batch, input_neurons), jnp.float32)
    params = init_params(kp, input_neurons)

    out = restaurants_dnn_forward(x, params)
    jax.block_until_ready(out)
    assert out.shape == (batch, 1)
    assert bool(jnp.all(jnp.isfinite(out)))

    ref = _reference_forward(x, params, bf16_activations=_use_bf16_activations())
    err = float(jnp.max(jnp.abs(out - ref)))
    assert jnp.allclose(out, ref, atol=1e-2, rtol=1e-2), err

    print("KERNEL_OK")
</pallas_src>

<mosaic_0001>
module attributes {stable_mosaic.version = 11 : i64} {
  func.func @_mlp_kernel(%arg0: i32, %arg1: memref<256x32xf32, #tpu.memory_space<vmem>>, %arg2: memref<128x32xbf16, #tpu.memory_space<vmem>>, %arg3: memref<128x1xf32, #tpu.memory_space<vmem>>, %arg4: memref<160x128xbf16, #tpu.memory_space<vmem>>, %arg5: memref<160x1xf32, #tpu.memory_space<vmem>>, %arg6: memref<64x160xbf16, #tpu.memory_space<vmem>>, %arg7: memref<64x1xf32, #tpu.memory_space<vmem>>, %arg8: memref<1x64xbf16, #tpu.memory_space<vmem>>, %arg9: memref<1x1xf32, #tpu.memory_space<vmem>>, %arg10: memref<1x256xf32, #tpu.memory_space<vmem>>) attributes {dimension_semantics = [#tpu.dimension_semantics<parallel>], iteration_bounds = array<i64: 2>, scalar_prefetch = 0 : i64, scratch_operands = 0 : i64, tpu.core_type = #tpu.core_type<tc>, window_params = [{transform_indices = @transform_0, window_bounds = array<i64: 256, 32>}, {pipeline_mode = #tpu.pipeline_mode<synchronous>, transform_indices = @transform_1, window_bounds = array<i64: 128, 32>}, {pipeline_mode = #tpu.pipeline_mode<synchronous>, transform_indices = @transform_2, window_bounds = array<i64: 128, 1>}, {pipeline_mode = #tpu.pipeline_mode<synchronous>, transform_indices = @transform_3, window_bounds = array<i64: 160, 128>}, {pipeline_mode = #tpu.pipeline_mode<synchronous>, transform_indices = @transform_4, window_bounds = array<i64: 160, 1>}, {pipeline_mode = #tpu.pipeline_mode<synchronous>, transform_indices = @transform_5, window_bounds = array<i64: 64, 160>}, {pipeline_mode = #tpu.pipeline_mode<synchronous>, transform_indices = @transform_6, window_bounds = array<i64: 64, 1>}, {pipeline_mode = #tpu.pipeline_mode<synchronous>, transform_indices = @transform_7, window_bounds = array<i64: 1, 64>}, {pipeline_mode = #tpu.pipeline_mode<synchronous>, transform_indices = @transform_8, window_bounds = array<i64: 1, 1>}, {transform_indices = @transform_9, window_bounds = array<i64: 1, 256>}]} {
    %c0 = arith.constant 0 : index
    %c0_0 = arith.constant 0 : index
    %0 = vector.load %arg1[%c0, %c0_0] : memref<256x32xf32, #tpu.memory_space<vmem>>, vector<256x32xf32>
    %1 = arith.truncf %0 : vector<256x32xf32> to vector<256x32xbf16>
    %c0_1 = arith.constant 0 : index
    %c0_2 = arith.constant 0 : index
    %2 = vector.load %arg2[%c0_1, %c0_2] : memref<128x32xbf16, #tpu.memory_space<vmem>>, vector<128x32xbf16>
    %cst = arith.constant dense<0.000000e+00> : vector<128x256xf32>
    %3 = tpu.matmul %2, %1, %cst {dimension_numbers = #tpu.dot_dimension_numbers<[1], [1], [0], [0], [0, 0, 1, 0], [], []>} : vector<128x32xbf16>, vector<256x32xbf16>, vector<128x256xf32> -> vector<128x256xf32>
    %c0_3 = arith.constant 0 : index
    %c0_4 = arith.constant 0 : index
    %4 = vector.load %arg3[%c0_3, %c0_4] : memref<128x1xf32, #tpu.memory_space<vmem>>, vector<128x1xf32>
    %5 = vector.broadcast %4 : vector<128x1xf32> to vector<128x256xf32>
    %6 = arith.addf %3, %5 : vector<128x256xf32>
    %7 = arith.truncf %6 : vector<128x256xf32> to vector<128x256xbf16>
    %8 = math.tanh %7 : vector<128x256xbf16>
    %c0_5 = arith.constant 0 : index
    %c0_6 = arith.constant 0 : index
    %9 = vector.load %arg4[%c0_5, %c0_6] : memref<160x128xbf16, #tpu.memory_space<vmem>>, vector<160x128xbf16>
    %cst_7 = arith.constant dense<0.000000e+00> : vector<160x256xf32>
    %10 = tpu.matmul %9, %8, %cst_7 {dimension_numbers = #tpu.dot_dimension_numbers<[1], [0], [0], [1], [0, 0, 1, 1], [], []>} : vector<160x128xbf16>, vector<128x256xbf16>, vector<160x256xf32> -> vector<160x256xf32>
    %c0_8 = arith.constant 0 : index
    %c0_9 = arith.constant 0 : index
    %11 = vector.load %arg5[%c0_8, %c0_9] : memref<160x1xf32, #tpu.memory_space<vmem>>, vector<160x1xf32>
    %12 = vector.broadcast %11 : vector<160x1xf32> to vector<160x256xf32>
    %13 = arith.addf %10, %12 : vector<160x256xf32>
    %14 = arith.truncf %13 : vector<160x256xf32> to vector<160x256xbf16>
    %cst_10 = arith.constant 0.000000e+00 : bf16
    %15 = vector.broadcast %cst_10 : bf16 to vector<160x256xbf16>
    %16 = arith.maximumf %14, %15 : vector<160x256xbf16>
    %c0_11 = arith.constant 0 : index
    %c0_12 = arith.constant 0 : index
    %17 = vector.load %arg6[%c0_11, %c0_12] : memref<64x160xbf16, #tpu.memory_space<vmem>>, vector<64x160xbf16>
    %cst_13 = arith.constant dense<0.000000e+00> : vector<64x256xf32>
    %18 = tpu.matmul %17, %16, %cst_13 {dimension_numbers = #tpu.dot_dimension_numbers<[1], [0], [0], [1], [0, 0, 1, 1], [], []>} : vector<64x160xbf16>, vector<160x256xbf16>, vector<64x256xf32> -> vector<64x256xf32>
    %c0_14 = arith.constant 0 : index
    %c0_15 = arith.constant 0 : index
    %19 = vector.load %arg7[%c0_14, %c0_15] : memref<64x1xf32, #tpu.memory_space<vmem>>, vector<64x1xf32>
    %20 = vector.broadcast %19 : vector<64x1xf32> to vector<64x256xf32>
    %21 = arith.addf %18, %20 : vector<64x256xf32>
    %22 = arith.truncf %21 : vector<64x256xf32> to vector<64x256xbf16>
    %cst_16 = arith.constant 0.000000e+00 : bf16
    %23 = vector.broadcast %cst_16 : bf16 to vector<64x256xbf16>
    %24 = arith.maximumf %22, %23 : vector<64x256xbf16>
    %c0_17 = arith.constant 0 : index
    %c0_18 = arith.constant 0 : index
    %25 = vector.load %arg8[%c0_17, %c0_18] : memref<1x64xbf16, #tpu.memory_space<vmem>>, vector<1x64xbf16>
    %cst_19 = arith.constant dense<0.000000e+00> : vector<1x256xf32>
    %26 = tpu.matmul %25, %24, %cst_19 {dimension_numbers = #tpu.dot_dimension_numbers<[1], [0], [0], [1], [0, 0, 1, 1], [], []>} : vector<1x64xbf16>, vector<64x256xbf16>, vector<1x256xf32> -> vector<1x256xf32>
    %c0_20 = arith.constant 0 : index
    %c0_21 = arith.constant 0 : index
    %27 = vector.load %arg9[%c0_20, %c0_21] : memref<1x1xf32, #tpu.memory_space<vmem>>, vector<1x1xf32>
    %28 = vector.broadcast %27 : vector<1x1xf32> to vector<1x256xf32>
    %29 = arith.addf %26, %28 : vector<1x256xf32>
    %30 = arith.negf %29 : vector<1x256xf32>
    %31 = math.exp %30 : vector<1x256xf32>
    %cst_22 = arith.constant 1.000000e+00 : f32
    %32 = vector.broadcast %cst_22 : f32 to vector<1x256xf32>
    %33 = arith.addf %32, %31 : vector<1x256xf32>
    %34 = arith.divf %32, %33 : vector<1x256xf32>
    %c0_23 = arith.constant 0 : index
    %c0_24 = arith.constant 0 : index
    %35 = vector.load %arg10[%c0_23, %c0_24] : memref<1x256xf32, #tpu.memory_space<vmem>>, vector<1x256xf32>
    tpu.vector_store %arg10[%c0_23, %c0_24], %34 {strides = array<i32>} : memref<1x256xf32, #tpu.memory_space<vmem>>, vector<1x256xf32>,
    return
  }
  func.func @transform_0(%arg0: i32) -> (i32, i32) {
    %c0_i32 = arith.constant 0 : i32
    %c0_i32_0 = arith.constant 0 : i32
    return %arg0, %c0_i32 : i32, i32
  }
  func.func @transform_1(%arg0: i32) -> (i32, i32) {
    %c0_i32 = arith.constant 0 : i32
    %c0_i32_0 = arith.constant 0 : i32
    %c0_i32_1 = arith.constant 0 : i32
    return %c0_i32, %c0_i32_0 : i32, i32
  }
  func.func @transform_2(%arg0: i32) -> (i32, i32) {
    %c0_i32 = arith.constant 0 : i32
    %c0_i32_0 = arith.constant 0 : i32
    %c0_i32_1 = arith.constant 0 : i32
    return %c0_i32, %c0_i32_0 : i32, i32
  }
  func.func @transform_3(%arg0: i32) -> (i32, i32) {
    %c0_i32 = arith.constant 0 : i32
    %c0_i32_0 = arith.constant 0 : i32
    %c0_i32_1 = arith.constant 0 : i32
    return %c0_i32, %c0_i32_0 : i32, i32
  }
  func.func @transform_4(%arg0: i32) -> (i32, i32) {
    %c0_i32 = arith.constant 0 : i32
    %c0_i32_0 = arith.constant 0 : i32
    %c0_i32_1 = arith.constant 0 : i32
    return %c0_i32, %c0_i32_0 : i32, i32
  }
  func.func @transform_5(%arg0: i32) -> (i32, i32) {
    %c0_i32 = arith.constant 0 : i32
    %c0_i32_0 = arith.constant 0 : i32
    %c0_i32_1 = arith.constant 0 : i32
    return %c0_i32, %c0_i32_0 : i32, i32
  }
  func.func @transform_6(%arg0: i32) -> (i32, i32) {
    %c0_i32 = arith.constant 0 : i32
    %c0_i32_0 = arith.constant 0 : i32
    %c0_i32_1 = arith.constant 0 : i32
    return %c0_i32, %c0_i32_0 : i32, i32
  }
  func.func @transform_7(%arg0: i32) -> (i32, i32) {
    %c0_i32 = arith.constant 0 : i32
    %c0_i32_0 = arith.constant 0 : i32
    %c0_i32_1 = arith.constant 0 : i32
    return %c0_i32, %c0_i32_0 : i32, i32
  }
  func.func @transform_8(%arg0: i32) -> (i32, i32) {
    %c0_i32 = arith.constant 0 : i32
    %c0_i32_0 = arith.constant 0 : i32
    %c0_i32_1 = arith.constant 0 : i32
    return %c0_i32, %c0_i32_0 : i32, i32
  }
  func.func @transform_9(%arg0: i32) -> (i32, i32) {
    %c0_i32 = arith.constant 0 : i32
    %c0_i32_0 = arith.constant 0 : i32
    return %c0_i32, %arg0 : i32, i32
  }
}

</mosaic_0001>

<llo_original>
// kernel: tpu_custom_call.1
$region0: #{tpu_custom_call.1}
  #allocation0 [shape = 'u32[]', space=smem, size = 0x4, offset = 0x4, fixed_abs, tag = 'smem constant byte address 0x4 - core index']
  #allocation1 [shape = 'u32[144,128]{1,0:T(1,128)}', space=vmem, size = 0x12000, scoped, tag = 'internal scratch']
  #allocation2 [shape = 'f32[1,1]{1,0:T(1,128)S(1)}', space=vmem, size = 0x200, scoped, tag = 'scoped memory for tpu_custom_call.1']
  %s0 = inlined_call_operand.vmem [shape: f32[300,32], index: 0, kind: input, shape index: {}]
  %s1 = inlined_call_operand.vmem [shape: bf16[128,32], index: 1, kind: input, shape index: {}]
  %s2 = inlined_call_operand.vmem [shape: f32[128,1], index: 2, kind: input, shape index: {}]
  %s3 = inlined_call_operand.vmem [shape: bf16[160,128], index: 3, kind: input, shape index: {}]
  %s4 = inlined_call_operand.vmem [shape: f32[160,1], index: 4, kind: input, shape index: {}]
  %s5 = inlined_call_operand.vmem [shape: bf16[64,160], index: 5, kind: input, shape index: {}]
  %s6 = inlined_call_operand.vmem [shape: f32[64,1], index: 6, kind: input, shape index: {}]
  %s7 = inlined_call_operand.vmem [shape: bf16[1,64], index: 7, kind: input, shape index: {}]
  %s8 = inlined_call_operand.<no memory space> [shape: f32[1,1], index: 8, kind: input, shape index: {}]
  %s9 = inlined_call_operand.hbm [shape: f32[1,300], index: 9, kind: output, shape index: {}]
  %s10 = sld [smem:[#allocation0]]
  $region69: #{tpu_custom_call.1} parent=0
    _
  %s12 = ssub.s32 1, %s10
  %s13 = scalar_select 0, %s12, %s10
  %v14 = vstv %s8
  %15 = vst [vmem:[#allocation2] sm:$0x1] %v14
  $region1: #{tpu_custom_call.1} parent=0
    #allocation3 [shape = 'u8[2048]{0}', space=vmem, size = 0x800, scoped, tag = 'output window, operand 0']
    #allocation4 [shape = 's32[2]{0}', space=sflag, size = 0x8, scoped, tag = 'scoped memory for tpu_custom_call.1']
    %16 = vsyncpa [#allocation4], 0
    %s17 = scalar_lea.sflag [#allocation4], 1
    %18 = vsyncpa %s17, 0
    loop: start=0, step=1, limit=4
    $region2: #{tpu_custom_call.1} parent=1 // loop_pre_header
      _
    $region3: #{tpu_custom_call.1} parent=1 // loop_header
      %s20 = sphi 0, %s24
      %p21 = scmp.ge.s32.totalorder %s20, 4
      %s30 = sphi 0, %s32
      %s33 = sphi 0, %s30
      %s34 = sphi 0, %s33
      %s50 = sphi 0, %s34
      %s54 = sphi 0, %s54
      %s56 = sphi 0, %s54
      %s57 = sphi 0, %s56
      %s71 = sphi 0, %s57
      %s75 = sphi 0, %s75
      %s77 = sphi 0, %s75
      %s78 = sphi 0, %s77
      %s92 = sphi 0, %s78
      %s96 = sphi 0, %s96
      %s98 = sphi 0, %s96
      %s99 = sphi 0, %s98
      %s113 = sphi 0, %s99
      %s117 = sphi 0, %s117
      %s119 = sphi 0, %s117
      %s120 = sphi 0, %s119
      %s134 = sphi 0, %s120
      %s138 = sphi 0, %s138
      %s140 = sphi 0, %s138
      %s141 = sphi 0, %s140
      %s155 = sphi 0, %s141
      %s159 = sphi 0, %s159
      %s161 = sphi 0, %s159
      %s162 = sphi 0, %s161
      %s176 = sphi 0, %s162
      %s180 = sphi 0, %s180
      %s182 = sphi 0, %s180
      %s183 = sphi 0, %s182
      %s197 = sphi 0, %s183
      %s201 = sphi 0, %s201
      %s203 = sphi 0, %s201
      %s204 = sphi 0, %s203
      %s218 = sphi 0, %s204
      %s224 = sphi 0, %s226
      %s227 = sphi 0, %s224
      %s228 = sphi 0, %s227
      %s244 = sphi 0, %s228
    $region4: #{tpu_custom_call.1} parent=1 // loop_header_branch
      %23 = sbr.rel (%p21) target = $region8
    $region5: #{tpu_custom_call.1} parent=1 // loop_body
      %s25 = ssub.s32 %s20, 1
      %s26 = ssub.s32 %s20, 2
      %s27 = sadd.s32 %s20, 1
      %s28 = ssub.s32 %s20, %s27
      %p29 = scmp.eq.s32.totalorder %s28, 0
      %s31 = sadd.s32 %s30, 1
      %s32 = scalar_select %p29, %s30, %s31
      %p35 = pneg %p29
      %p36 = scmp.eq.s32.totalorder %s20, 1
      %p37 = por %p35, %p36
      %p38 = scmp.ne.s32.totalorder %s30, %s33
      %p39 = scmp.eq.s32.totalorder %s20, 0
      %p40 = por %p38, %p39
      %p41 = scmp.ne.s32.totalorder %s30, %s33
      %p42 = scmp.eq.s32.totalorder %s25, 1
      %p43 = por %p41, %p42
      %p44 = scmp.ne.s32.totalorder %s33, %s34
      %p45 = scmp.eq.s32.totalorder %s25, 0
      %p46 = por %p44, %p45
      %p47 = scmp.ne.s32.totalorder %s33, %s34
      %p48 = scmp.eq.s32.totalorder %s26, 1
      %p49 = por %p47, %p48
      %p51 = scmp.ne.s32.totalorder %s34, %s50
      %p52 = scmp.eq.s32.totalorder %s26, 0
      %p53 = por %p51, %p52
      %s55 = sadd.s32 %s54, 1
      %p58 = scmp.eq.s32.totalorder %s20, 1
      %p59 = scmp.ne.s32.totalorder %s54, %s56
      %p60 = scmp.eq.s32.totalorder %s20, 0
      %p61 = por %p59, %p60
      %p62 = scmp.ne.s32.totalorder %s54, %s56
      %p63 = scmp.eq.s32.totalorder %s25, 1
      %p64 = por %p62, %p63
      %p65 = scmp.ne.s32.totalorder %s56, %s57
      %p66 = scmp.eq.s32.totalorder %s25, 0
      %p67 = por %p65, %p66
      %p68 = scmp.ne.s32.totalorder %s56, %s57
      %p69 = scmp.eq.s32.totalorder %s26, 1
      %p70 = por %p68, %p69
      %p72 = scmp.ne.s32.totalorder %s57, %s71
      %p73 = scmp.eq.s32.totalorder %s26, 0
      %p74 = por %p72, %p73
      %s76 = sadd.s32 %s75, 1
      %p79 = scmp.eq.s32.totalorder %s20, 1
      %p80 = scmp.ne.s32.totalorder %s75, %s77
      %p81 = scmp.eq.s32.totalorder %s20, 0
      %p82 = por %p80, %p81
      %p83 = scmp.ne.s32.totalorder %s75, %s77
      %p84 = scmp.eq.s32.totalorder %s25, 1
      %p85 = por %p83, %p84
      %p86 = scmp.ne.s32.totalorder %s77, %s78
      %p87 = scmp.eq.s32.totalorder %s25, 0
      %p88 = por %p86, %p87
      %p89 = scmp.ne.s32.totalorder %s77, %s78
      %p90 = scmp.eq.s32.totalorder %s26, 1
      %p91 = por %p89, %p90
      %p93 = scmp.ne.s32.totalorder %s78, %s92
      %p94 = scmp.eq.s32.totalorder %s26, 0
      %p95 = por %p93, %p94
      %s97 = sadd.s32 %s96, 1
      %p100 = scmp.eq.s32.totalorder %s20, 1
      %p101 = scmp.ne.s32.totalorder %s96, %s98
      %p102 = scmp.eq.s32.totalorder %s20, 0
      %p103 = por %p101, %p102
      %p104 = scmp.ne.s32.totalorder %s96, %s98
      %p105 = scmp.eq.s32.totalorder %s25, 1
      %p106 = por %p104, %p105
      %p107 = scmp.ne.s32.totalorder %s98, %s99
      %p108 = scmp.eq.s32.totalorder %s25, 0
      %p109 = por %p107, %p108
      %p110 = scmp.ne.s32.totalorder %s98, %s99
      %p111 = scmp.eq.s32.totalorder %s26, 1
      %p112 = por %p110, %p111
      %p114 = scmp.ne.s32.totalorder %s99, %s113
      %p115 = scmp.eq.s32.totalorder %s26, 0
      %p116 = por %p114, %p115
      %s118 = sadd.s32 %s117, 1
      %p121 = scmp.eq.s32.totalorder %s20, 1
      %p122 = scmp.ne.s32.totalorder %s117, %s119
      %p123 = scmp.eq.s32.totalorder %s20, 0
      %p124 = por %p122, %p123
      %p125 = scmp.ne.s32.totalorder %s117, %s119
      %p126 = scmp.eq.s32.totalorder %s25, 1
      %p127 = por %p125, %p126
      %p128 = scmp.ne.s32.totalorder %s119, %s120
      %p129 = scmp.eq.s32.totalorder %s25, 0
      %p130 = por %p128, %p129
      %p131 = scmp.ne.s32.totalorder %s119, %s120
      %p132 = scmp.eq.s32.totalorder %s26, 1
      %p133 = por %p131, %p132
      %p135 = scmp.ne.s32.totalorder %s120, %s134
      %p136 = scmp.eq.s32.totalorder %s26, 0
      %p137 = por %p135, %p136
      %s139 = sadd.s32 %s138, 1
      %p142 = scmp.eq.s32.totalorder %s20, 1
      %p143 = scmp.ne.s32.totalorder %s138, %s140
      %p144 = scmp.eq.s32.totalorder %s20, 0
      %p145 = por %p143, %p144
      %p146 = scmp.ne.s32.totalorder %s138, %s140
      %p147 = scmp.eq.s32.totalorder %s25, 1
      %p148 = por %p146, %p147
      %p149 = scmp.ne.s32.totalorder %s140, %s141
      %p150 = scmp.eq.s32.totalorder %s25, 0
      %p151 = por %p149, %p150
      %p152 = scmp.ne.s32.totalorder %s140, %s141
      %p153 = scmp.eq.s32.totalorder %s26, 1
      %p154 = por %p152, %p153
      %p156 = scmp.ne.s32.totalorder %s141, %s155
      %p157 = scmp.eq.s32.totalorder %s26, 0
      %p158 = por %p156, %p157
      %s160 = sadd.s32 %s159, 1
      %p163 = scmp.eq.s32.totalorder %s20, 1
      %p164 = scmp.ne.s32.totalorder %s159, %s161
      %p165 = scmp.eq.s32.totalorder %s20, 0
      %p166 = por %p164, %p165
      %p167 = scmp.ne.s32.totalorder %s159, %s161
      %p168 = scmp.eq.s32.totalorder %s25, 1
      %p169 = por %p167, %p168
      %p170 = scmp.ne.s32.totalorder %s161, %s162
      %p171 = scmp.eq.s32.totalorder %s25, 0
      %p172 = por %p170, %p171
      %p173 = scmp.ne.s32.totalorder %s161, %s162
      %p174 = scmp.eq.s32.totalorder %s26, 1
      %p175 = por %p173, %p174
      %p177 = scmp.ne.s32.totalorder %s162, %s176
      %p178 = scmp.eq.s32.totalorder %s26, 0
      %p179 = por %p177, %p178
      %s181 = sadd.s32 %s180, 1
      %p184 = scmp.eq.s32.totalorder %s20, 1
      %p185 = scmp.ne.s32.totalorder %s180, %s182
      %p186 = scmp.eq.s32.totalorder %s20, 0
      %p187 = por %p185, %p186
      %p188 = scmp.ne.s32.totalorder %s180, %s182
      %p189 = scmp.eq.s32.totalorder %s25, 1
      %p190 = por %p188, %p189
      %p191 = scmp.ne.s32.totalorder %s182, %s183
      %p192 = scmp.eq.s32.totalorder %s25, 0
      %p193 = por %p191, %p192
      %p194 = scmp.ne.s32.totalorder %s182, %s183
      %p195 = scmp.eq.s32.totalorder %s26, 1
      %p196 = por %p194, %p195
      %p198 = scmp.ne.s32.totalorder %s183, %s197
      %p199 = scmp.eq.s32.totalorder %s26, 0
      %p200 = por %p198, %p199
      %s202 = sadd.s32 %s201, 1
      %p205 = scmp.eq.s32.totalorder %s20, 1
      %p206 = scmp.ne.s32.totalorder %s201, %s203
      %p207 = scmp.eq.s32.totalorder %s20, 0
      %p208 = por %p206, %p207
      %p209 = scmp.ne.s32.totalorder %s201, %s203
      %p210 = scmp.eq.s32.totalorder %s25, 1
      %p211 = por %p209, %p210
      %p212 = scmp.ne.s32.totalorder %s203, %s204
      %p213 = scmp.eq.s32.totalorder %s25, 0
      %p214 = por %p212, %p213
      %p215 = scmp.ne.s32.totalorder %s203, %s204
      %p216 = scmp.eq.s32.totalorder %s26, 1
      %p217 = por %p215, %p216
      %p219 = scmp.ne.s32.totalorder %s204, %s218
      %p220 = scmp.eq.s32.totalorder %s26, 0
      %p221 = por %p219, %p220
      %s222 = ssub.s32 %s20, %s27
      %p223 = scmp.eq.s32.totalorder %s222, 0
      %s225 = sadd.s32 %s224, 1
      %s226 = scalar_select %p223, %s224, %s225
      %p229 = pneg %p223
      %p230 = scmp.eq.s32.totalorder %s20, 1
      %p231 = por %p229, %p230
      %p232 = scmp.ne.s32.totalorder %s224, %s227
      %p233 = scmp.eq.s32.totalorder %s20, 0
      %p234 = por %p232, %p233
      %p235 = scmp.ne.s32.totalorder %s224, %s227
      %p236 = scmp.eq.s32.totalorder %s25, 1
      %p237 = por %p235, %p236
      %p238 = scmp.ne.s32.totalorder %s227, %s228
      %p239 = scmp.eq.s32.totalorder %s25, 0
      %p240 = por %p238, %p239
      %p241 = scmp.ne.s32.totalorder %s227, %s228
      %p242 = scmp.eq.s32.totalorder %s26, 1
      %p243 = por %p241, %p242
      %p245 = scmp.ne.s32.totalorder %s228, %s244
      %p246 = scmp.eq.s32.totalorder %s26, 0
      %p247 = por %p245, %p246
      %p248 = scmp.le.s32.totalorder 1, %s20
      %p249 = scmp.lt.s32.totalorder %s20, 3
      %p250 = pnand %p248, %p249
      %p251 = pneg %p250
      // Predicated region
      $region9: #{tpu_custom_call.1} parent=5 // pred_check
        _
      $region10: #{tpu_custom_call.1} parent=5 // pred_check_branch
        %253 = sbr.rel (%p250) target = $region12
      $region11: #{tpu_custom_call.1} parent=5 // pred_region
        %s254 = ssub.s32 %s20, 1
        // Predicated region
        $region13: #{tpu_custom_call.1} parent=11 // pred_check
          %p255 = pneg %p67
        $region14: #{tpu_custom_call.1} parent=11 // pred_check_branch
          %257 = sbr.rel (%p255) target = $region16
        $region15: #{tpu_custom_call.1} parent=11 // pred_region
          _
        $region16: #{tpu_custom_call.1} parent=11 // pred_fallthru
          _
        // Predicated region
        $region17: #{tpu_custom_call.1} parent=11 // pred_check
          %p258 = pneg %p88
        $region18: #{tpu_custom_call.1} parent=11 // pred_check_branch
          %260 = sbr.rel (%p258) target = $region20
        $region19: #{tpu_custom_call.1} parent=11 // pred_region
          _
        $region20: #{tpu_custom_call.1} parent=11 // pred_fallthru
          _
        // Predicated region
        $region21: #{tpu_custom_call.1} parent=11 // pred_check
          %p261 = pneg %p109
        $region22: #{tpu_custom_call.1} parent=11 // pred_check_branch
          %263 = sbr.rel (%p261) target = $region24
        $region23: #{tpu_custom_call.1} parent=11 // pred_region
          _
        $region24: #{tpu_custom_call.1} parent=11 // pred_fallthru
          _
        // Predicated region
        $region25: #{tpu_custom_call.1} parent=11 // pred_check
          %p264 = pneg %p130
        $region26: #{tpu_custom_call.1} parent=11 // pred_check_branch
          %266 = sbr.rel (%p264) target = $region28
        $region27: #{tpu_custom_call.1} parent=11 // pred_region
          _
        $region28: #{tpu_custom_call.1} parent=11 // pred_fallthru
          _
        // Predicated region
        $region29: #{tpu_custom_call.1} parent=11 // pred_check
          %p267 = pneg %p151
        $region30: #{tpu_custom_call.1} parent=11 // pred_check_branch
          %269 = sbr.rel (%p267) target = $region32
        $region31: #{tpu_custom_call.1} parent=11 // pred_region
          _
        $region32: #{tpu_custom_call.1} parent=11 // pred_fallthru
          _
        // Predicated region
        $region33: #{tpu_custom_call.1} parent=11 // pred_check
          %p270 = pneg %p172
        $region34: #{tpu_custom_call.1} parent=11 // pred_check_branch
          %272 = sbr.rel (%p270) target = $region36
        $region35: #{tpu_custom_call.1} parent=11 // pred_region
          _
        $region36: #{tpu_custom_call.1} parent=11 // pred_fallthru
          _
        // Predicated region
        $region37: #{tpu_custom_call.1} parent=11 // pred_check
          %p273 = pneg %p193
        $region38: #{tpu_custom_call.1} parent=11 // pred_check_branch
          %275 = sbr.rel (%p273) target = $region40
        $region39: #{tpu_custom_call.1} parent=11 // pred_region
          _
        $region40: #{tpu_custom_call.1} parent=11 // pred_fallthru
          _
        // Predicated region
        $region41: #{tpu_custom_call.1} parent=11 // pred_check
          %p276 = pneg %p214
        $region42: #{tpu_custom_call.1} parent=11 // pred_check_branch
          %278 = sbr.rel (%p276) target = $region44
        $region43: #{tpu_custom_call.1} parent=11 // pred_region
          _
        $region44: #{tpu_custom_call.1} parent=11 // pred_fallthru
          _
      $region12: #{tpu_custom_call.1} parent=5 // pred_fallthru
        _
      %p279 = scmp.lt.s32.totalorder %s20, 2
      // Predicated region
      $region45: #{tpu_custom_call.1} parent=5 // pred_check
        %p280 = pneg %p279
      $region46: #{tpu_custom_call.1} parent=5 // pred_check_branch
        %282 = sbr.rel (%p280) target = $region48
      $region47: #{tpu_custom_call.1} parent=5 // pred_region
        // Predicated region
        $region49: #{tpu_custom_call.1} parent=47 // pred_check
          %p283 = pneg %p40
        $region50: #{tpu_custom_call.1} parent=47 // pred_check_branch
          %285 = sbr.rel (%p283) target = $region52
        $region51: #{tpu_custom_call.1} parent=47 // pred_region
          %s286 = smul.u32 32, %s20
          %s287 = ssub.s32 38, %s286
          %p288 = scmp.lt.s32.totalorder %s287, 32
          %s289 = scalar_select %p288, %s287, 32
          %s290 = smul.u32 128, %s289
          %p291 = scmp.lt.s32.totalorder %s286, 37
          %s292 = scalar_select %p291, %s286, 37
          %s293 = smul.addr %s292, 8
          %s294 = scalar_lea.vmem %s0, %s293
          %s295 = smul.u32 32, %s20
          %s296 = ssub.s32 38, %s295
          %p297 = scmp.lt.s32.totalorder %s296, 32
          %s298 = scalar_select %p297, %s296, 32
          %s299 = smul.u32 128, %s298
        $region52: #{tpu_custom_call.1} parent=47 // pred_fallthru
          _
      $region48: #{tpu_custom_call.1} parent=5 // pred_fallthru
        _
      %p300 = scmp.le.s32.totalorder 1, %s20
      %p301 = scmp.lt.s32.totalorder %s20, 3
      %p302 = pnand %p300, %p301
      %p303 = pneg %p302
      // Predicated region
      $region53: #{tpu_custom_call.1} parent=5 // pred_check
        _
      $region54: #{tpu_custom_call.1} parent=5 // pred_check_branch
        %305 = sbr.rel (%p302) target = $region56
      $region55: #{tpu_custom_call.1} parent=5 // pred_region
        %s306 = ssub.s32 %s20, 1
        %s307 = smul.u32 32, %s25
        %s308 = ssub.s32 38, %s307
        %p309 = scmp.lt.s32.totalorder %s308, 32
        %s310 = scalar_select %p309, %s308, 32
        %s311 = smul.u32 128, %s310
        %p312 = scmp.lt.s32.totalorder %s307, 37
        %s313 = scalar_select %p312, %s307, 37
        %s314 = smul.addr %s313, 8
        %s315 = scalar_lea.vmem %s0, %s314
        %p316 = pneg %p46
        %p317 = pneg %p43
        %p318 = pneg %p67
        %p319 = pneg %p64
        %p320 = pneg %p88
        %p321 = pneg %p85
        %p322 = pneg %p109
        %p323 = pneg %p106
        %p324 = pneg %p130
        %p325 = pneg %p127
        %p326 = pneg %p151
        %p327 = pneg %p148
        %p328 = pneg %p172
        %p329 = pneg %p169
        %p330 = pneg %p193
        %p331 = pneg %p190
        %p332 = pneg %p214
        %p333 = pneg %p211
        %p334 = pneg %p240
        %p335 = pneg %p237
        %s336 = sand.u32 %s227, 1
        %s337 = scalar_lea.sflag [#allocation4], %s336
        %s338 = sand.u32 %s227, 1
        %s339 = smul.addr %s338, 2
        %s340 = scalar_lea.vmem [#allocation3], %s339
        %s341 = smul.u32 32, %s25
        %s342 = ssub.s32 38, %s341
        %p343 = scmp.lt.s32.totalorder %s342, 32
        %s344 = scalar_select %p343, %s342, 32
        %s345 = smul.u32 128, %s344
        %p346 = scmp.lt.s32.totalorder %s341, 37
        %s347 = scalar_select %p346, %s341, 37
        %s348 = smul.addr %s347, 8
        %s349 = scalar_lea.vmem %s0, %s348
        %s350 = smul.u32 32, %s25
        %s351 = ssub.s32 38, %s350
        %p352 = scmp.lt.s32.totalorder %s351, 32
        %s353 = scalar_select %p352, %s351, 32
        %s354 = smul.u32 128, %s353
        %s355 = smul.u32 2, %s25
        %s356 = ssub.s32 3, %s355
        %p357 = scmp.lt.s32.totalorder %s356, 2
        %s358 = scalar_select %p357, %s356, 2
        %s359 = smul.u32 16, %s358
        %v361 = vld [vmem:[%s349] sm:$0xff]
        %v362 = vld [vmem:[%s349 + $0x8] sm:$0xff]
        %v363 = vld [vmem:[%s349 + $0x10] sm:$0xff]
        %v364 = vld [vmem:[%s349 + $0x18] sm:$0xff]
        %v365 = vld [vmem:[%s349 + $0x20] sm:$0xff]
        %v366 = vld [vmem:[%s349 + $0x28] sm:$0xff]
        %v367 = vld [vmem:[%s349 + $0x30] sm:$0xff]
        %v368 = vld [vmem:[%s349 + $0x38] sm:$0xff]
        %v369 = vld [vmem:[%s349 + $0x40] sm:$0xff]
        %v370 = vld [vmem:[%s349 + $0x48] sm:$0xff]
        %v371 = vld [vmem:[%s349 + $0x50] sm:$0xff]
        %v372 = vld [vmem:[%s349 + $0x58] sm:$0xff]
        %v373 = vld [vmem:[%s349 + $0x60] sm:$0xff]
        %v374 = vld [vmem:[%s349 + $0x68] sm:$0xff]
        %v375 = vld [vmem:[%s349 + $0x70] sm:$0xff]
        %v376 = vld [vmem:[%s349 + $0x78] sm:$0xff]
        %v377 = vld [vmem:[%s349 + $0x80] sm:$0xff]
        %v378 = vld [vmem:[%s349 + $0x88] sm:$0xff]
        %v379 = vld [vmem:[%s349 + $0x90] sm:$0xff]
        %v380 = vld [vmem:[%s349 + $0x98] sm:$0xff]
        %v381 = vld [vmem:[%s349 + $0xa0] sm:$0xff]
        %v382 = vld [vmem:[%s349 + $0xa8] sm:$0xff]
        %v383 = vld [vmem:[%s349 + $0xb0] sm:$0xff]
        %v384 = vld [vmem:[%s349 + $0xb8] sm:$0xff]
        %v385 = vld [vmem:[%s349 + $0xc0] sm:$0xff]
        %v386 = vld [vmem:[%s349 + $0xc8] sm:$0xff]
        %v387 = vld [vmem:[%s349 + $0xd0] sm:$0xff]
        %v388 = vld [vmem:[%s349 + $0xd8] sm:$0xff]
        %v389 = vld [vmem:[%s349 + $0xe0] sm:$0xff]
        %v390 = vld [vmem:[%s349 + $0xe8] sm:$0xff]
        %v391 = vld [vmem:[%s349 + $0xf0] sm:$0xff]
        %v392 = vld [vmem:[%s349 + $0xf8] sm:$0xff]
        %v393 = vpack.c.bf16 %v362, %v361
        %v394 = vpack.c.bf16 %v364, %v363
        %v395 = vpack.c.bf16 %v366, %v365
        %v396 = vpack.c.bf16 %v368, %v367
        %v397 = vpack.c.bf16 %v370, %v369
        %v398 = vpack.c.bf16 %v372, %v371
        %v399 = vpack.c.bf16 %v374, %v373
        %v400 = vpack.c.bf16 %v376, %v375
        %v401 = vpack.c.bf16 %v378, %v377
        %v402 = vpack.c.bf16 %v380, %v379
        %v403 = vpack.c.bf16 %v382, %v381
        %v404 = vpack.c.bf16 %v384, %v383
        %v405 = vpack.c.bf16 %v386, %v385
        %v406 = vpack.c.bf16 %v388, %v387
        %v407 = vpack.c.bf16 %v390, %v389
        %v408 = vpack.c.bf16 %v392, %v391
        %v409 = vld [vmem:[%s1] sm:$0xf]
        %v410 = vld [vmem:[%s1 + $0x4] sm:$0xf]
        %v411 = vld [vmem:[%s1 + $0x8] sm:$0xf]
        %v412 = vld [vmem:[%s1 + $0xc] sm:$0xf]
        %v413 = vld [vmem:[%s1 + $0x10] sm:$0xf]
        %v414 = vld [vmem:[%s1 + $0x14] sm:$0xf]
        %v415 = vld [vmem:[%s1 + $0x18] sm:$0xf]
        %v416 = vld [vmem:[%s1 + $0x1c] sm:$0xf]
        %v417 = vld [vmem:[%s1 + $0x20] sm:$0xf]
        %v418 = vld [vmem:[%s1 + $0x24] sm:$0xf]
        %v419 = vld [vmem:[%s1 + $0x28] sm:$0xf]
        %v420 = vld [vmem:[%s1 + $0x2c] sm:$0xf]
        %v421 = vld [vmem:[%s1 + $0x30] sm:$0xf]
        %v422 = vld [vmem:[%s1 + $0x34] sm:$0xf]
        %v423 = vld [vmem:[%s1 + $0x38] sm:$0xf]
        %v424 = vld [vmem:[%s1 + $0x3c] sm:$0xf]
        %v425 = vld [vmem:[%s2] sm:$0xff]
        %v426 = vld [vmem:[%s2 + $0x8] sm:$0xff]
        %v427 = vld [vmem:[%s2 + $0x10] sm:$0xff]
        %v428 = vld [vmem:[%s2 + $0x18] sm:$0xff]
        %v429 = vld [vmem:[%s2 + $0x20] sm:$0xff]
        %v430 = vld [vmem:[%s2 + $0x28] sm:$0xff]
        %v431 = vld [vmem:[%s2 + $0x30] sm:$0xff]
        %v432 = vld [vmem:[%s2 + $0x38] sm:$0xff]
        %v433 = vld [vmem:[%s2 + $0x40] sm:$0xff]
        %v434 = vld [vmem:[%s2 + $0x48] sm:$0xff]
        %v435 = vld [vmem:[%s2 + $0x50] sm:$0xff]
        %v436 = vld [vmem:[%s2 + $0x58] sm:$0xff]
        %v437 = vld [vmem:[%s2 + $0x60] sm:$0xff]
        %v438 = vld [vmem:[%s2 + $0x68] sm:$0xff]
        %v439 = vld [vmem:[%s2 + $0x70] sm:$0xff]
        %v440 = vld [vmem:[%s2 + $0x78] sm:$0xff]
        %442 = vset.pattern.permute.xlu0 0
        %443 = vperm.xlu0 %442, %v425
        %v444 = vpop.permute.xlu0 %443
        %447 = vset.pattern.permute.xlu0 0
        %448 = vperm.xlu0 %447, %v426
        %v449 = vpop.permute.xlu0 %448
        %452 = vset.pattern.permute.xlu0 0
        %453 = vperm.xlu0 %452, %v427
        %v454 = vpop.permute.xlu0 %453
        %457 = vset.pattern.permute.xlu0 0
        %458 = vperm.xlu0 %457, %v428
        %v459 = vpop.permute.xlu0 %458
        %462 = vset.pattern.permute.xlu0 0
        %463 = vperm.xlu0 %462, %v429
        %v464 = vpop.permute.xlu0 %463
        %467 = vset.pattern.permute.xlu0 0
        %468 = vperm.xlu0 %467, %v430
        %v469 = vpop.permute.xlu0 %468
        %472 = vset.pattern.permute.xlu0 0
        %473 = vperm.xlu0 %472, %v431
        %v474 = vpop.permute.xlu0 %473
        %477 = vset.pattern.permute.xlu0 0
        %478 = vperm.xlu0 %477, %v432
        %v479 = vpop.permute.xlu0 %478
        %482 = vset.pattern.permute.xlu0 0
        %483 = vperm.xlu0 %482, %v433
        %v484 = vpop.permute.xlu0 %483
        %487 = vset.pattern.permute.xlu0 0
        %488 = vperm.xlu0 %487, %v434
        %v489 = vpop.permute.xlu0 %488
        %492 = vset.pattern.permute.xlu0 0
        %493 = vperm.xlu0 %492, %v435
        %v494 = vpop.permute.xlu0 %493
        %497 = vset.pattern.permute.xlu0 0
        %498 = vperm.xlu0 %497, %v436
        %v499 = vpop.permute.xlu0 %498
        %502 = vset.pattern.permute.xlu0 0
        %503 = vperm.xlu0 %502, %v437
        %v504 = vpop.permute.xlu0 %503
        %507 = vset.pattern.permute.xlu0 0
        %508 = vperm.xlu0 %507, %v438
        %v509 = vpop.permute.xlu0 %508
        %512 = vset.pattern.permute.xlu0 0
        %513 = vperm.xlu0 %512, %v439
        %v514 = vpop.permute.xlu0 %513
        %517 = vset.pattern.permute.xlu0 0
        %518 = vperm.xlu0 %517, %v440
        %v519 = vpop.permute.xlu0 %518
        %v537 = vunpack.c.l.b16 %v409
        %v538 = vunpack.c.l.b16 %v410
        %v539 = vunpack.c.l.b16 %v411
        %v540 = vunpack.c.l.b16 %v412
        %v541 = vunpack.c.l.b16 %v413
        %v542 = vunpack.c.l.b16 %v414
        %v543 = vunpack.c.l.b16 %v415
        %v544 = vunpack.c.l.b16 %v416
        %v545 = vunpack.c.l.b16 %v417
        %v546 = vunpack.c.l.b16 %v418
        %v547 = vunpack.c.l.b16 %v419
        %v548 = vunpack.c.l.b16 %v420
        %v549 = vunpack.c.l.b16 %v421
        %v550 = vunpack.c.l.b16 %v422
        %v551 = vunpack.c.l.b16 %v423
        %v552 = vunpack.c.l.b16 %v424
        %v553 = vpack.c.b16 %v538, %v537
        %v554 = vpack.c.b16 %v540, %v539
        %v555 = vpack.c.b16 %v542, %v541
        %v556 = vpack.c.b16 %v544, %v543
        %v557 = vpack.c.b16 %v546, %v545
        %v558 = vpack.c.b16 %v548, %v547
        %v559 = vpack.c.b16 %v550, %v549
        %v560 = vpack.c.b16 %v552, %v551
        %vm561 = vcmask 261120
        %v563 = vsel %vm561, %v553, 0
        %v566 = vsel %vm561, %v554, 0
        %v569 = vsel %vm561, %v555, 0
        %v572 = vsel %vm561, %v556, 0
        %v575 = vsel %vm561, %v557, 0
        %v578 = vsel %vm561, %v558, 0
        %v581 = vsel %vm561, %v559, 0
        %v584 = vsel %vm561, %v560, 0
        %v587 = vsel %vm561, %v393, 0
        %v590 = vsel %vm561, %v394, 0
        %v593 = vsel %vm561, %v395, 0
        %v596 = vsel %vm561, %v396, 0
        %v599 = vsel %vm561, %v397, 0
        %v602 = vsel %vm561, %v398, 0
        %v605 = vsel %vm561, %v399, 0
        %v608 = vsel %vm561, %v400, 0
        %v611 = vsel %vm561, %v401, 0
        %v614 = vsel %vm561, %v402, 0
        %v617 = vsel %vm561, %v403, 0
        %v620 = vsel %vm561, %v404, 0
        %v623 = vsel %vm561, %v405, 0
        %v626 = vsel %vm561, %v406, 0
        %v629 = vsel %vm561, %v407, 0
        %v632 = vsel %vm561, %v408, 0
        %634 = vmatprep.subr.bf16.mxu0 0
        %635 = vmatpush1.bf16.xpose.msra.mxu0 %v587
        %636 = vmatprep.subr.bf16.mxu0 0
        %637 = vmatpush1.bf16.xpose.msra.mxu0 %v590
        %638 = vmatprep.subr.bf16.mxu0 0
        %639 = vmatpush1.bf16.xpose.msra.mxu0 %v593
        %640 = vmatprep.subr.bf16.mxu0 0
        %641 = vmatpush1.bf16.xpose.msra.mxu0 %v596
        %642 = vmatprep.subr.bf16.mxu0 0
        %643 = vmatpush1.bf16.xpose.msra.mxu0 %v599
        %644 = vmatprep.subr.bf16.mxu0 0
        %645 = vmatpush1.bf16.xpose.msra.mxu0 %v602
        %646 = vmatprep.subr.bf16.mxu0 0
        %647 = vmatpush1.bf16.xpose.msra.mxu0 %v605
        %648 = vmatprep.subr.bf16.mxu0 0
        %649 = vmatpush1.bf16.xpose.msra.mxu0 %v608
        %650 = vmatprep.subr.bf16.mxu0 0
        %651 = vmatpush1.bf16.xpose.msra.mxu0 %v611
        %652 = vmatprep.subr.bf16.mxu0 0
        %653 = vmatpush1.bf16.xpose.msra.mxu0 %v614
        %654 = vmatprep.subr.bf16.mxu0 0
        %655 = vmatpush1.bf16.xpose.msra.mxu0 %v617
        %656 = vmatprep.subr.bf16.mxu0 0
        %657 = vmatpush1.bf16.xpose.msra.mxu0 %v620
        %658 = vmatprep.subr.bf16.mxu0 0
        %659 = vmatpush1.bf16.xpose.msra.mxu0 %v623
        %660 = vmatprep.subr.bf16.mxu0 0
        %661 = vmatpush1.bf16.xpose.msra.mxu0 %v626
        %662 = vmatprep.subr.bf16.mxu0 0
        %663 = vmatpush1.bf16.xpose.msra.mxu0 %v629
        %664 = vmatprep.subr.bf16.mxu0 0
        %665 = vmatpush1.bf16.xpose.msra.mxu0 %v632
        %666 = vmatprep.mubr.bf16.mxu0 0
        %667 = vmatmul.mubr.bf16.gmra.mrb[0].mxu0 %v563
        %v668 = vpop.f32.mrb[0].mxu0
        %v669 = vadd.f32 %v444, %v668
        %v670 = vpop.f32.mrb[0].mxu0
        %v671 = vadd.f32 %v444, %v670
        %v672 = vpop.f32.mrb[0].mxu0
        %v673 = vadd.f32 %v449, %v672
        %v674 = vpop.f32.mrb[0].mxu0
        %v675 = vadd.f32 %v449, %v674
        %676 = vmatprep.mubr.bf16.mxu0 0
        %677 = vmatmul.mubr.bf16.gmra.mrb[0].mxu0 %v566
        %v678 = vpop.f32.mrb[0].mxu0
        %v679 = vadd.f32 %v454, %v678
        %v680 = vpop.f32.mrb[0].mxu0
        %v681 = vadd.f32 %v454, %v680
        %v682 = vpop.f32.mrb[0].mxu0
        %v683 = vadd.f32 %v459, %v682
        %v684 = vpop.f32.mrb[0].mxu0
        %v685 = vadd.f32 %v459, %v684
        %686 = vmatprep.mubr.bf16.mxu0 0
        %687 = vmatmul.mubr.bf16.gmra.mrb[0].mxu0 %v569
        %v688 = vpop.f32.mrb[0].mxu0
        %v689 = vadd.f32 %v464, %v688
        %v690 = vpop.f32.mrb[0].mxu0
        %v691 = vadd.f32 %v464, %v690
        %v692 = vpop.f32.mrb[0].mxu0
        %v693 = vadd.f32 %v469, %v692
        %v694 = vpop.f32.mrb[0].mxu0
        %v695 = vadd.f32 %v469, %v694
        %696 = vmatprep.mubr.bf16.mxu0 0
        %697 = vmatmul.mubr.bf16.gmra.mrb[0].mxu0 %v572
        %v698 = vpop.f32.mrb[0].mxu0
        %v699 = vadd.f32 %v474, %v698
        %v700 = vpop.f32.mrb[0].mxu0
        %v701 = vadd.f32 %v474, %v700
        %v702 = vpop.f32.mrb[0].mxu0
        %v703 = vadd.f32 %v479, %v702
        %v704 = vpop.f32.mrb[0].mxu0
        %v705 = vadd.f32 %v479, %v704
        %706 = vmatprep.mubr.bf16.mxu0 0
        %707 = vmatmul.mubr.bf16.gmra.mrb[0].mxu0 %v575
        %v708 = vpop.f32.mrb[0].mxu0
        %v709 = vadd.f32 %v484, %v708
        %v710 = vpop.f32.mrb[0].mxu0
        %v711 = vadd.f32 %v484, %v710
        %v712 = vpop.f32.mrb[0].mxu0
        %v713 = vadd.f32 %v489, %v712
        %v714 = vpop.f32.mrb[0].mxu0
        %v715 = vadd.f32 %v489, %v714
        %716 = vmatprep.mubr.bf16.mxu0 0
        %717 = vmatmul.mubr.bf16.gmra.mrb[0].mxu0 %v578
        %v718 = vpop.f32.mrb[0].mxu0
        %v719 = vadd.f32 %v494, %v718
        %v720 = vpop.f32.mrb[0].mxu0
        %v721 = vadd.f32 %v494, %v720
        %v722 = vpop.f32.mrb[0].mxu0
        %v723 = vadd.f32 %v499, %v722
        %v724 = vpop.f32.mrb[0].mxu0
        %v725 = vadd.f32 %v499, %v724
        %726 = vmatprep.mubr.bf16.mxu0 0
        %727 = vmatmul.mubr.bf16.gmra.mrb[0].mxu0 %v581
        %v728 = vpop.f32.mrb[0].mxu0
        %v729 = vadd.f32 %v504, %v728
        %v730 = vpop.f32.mrb[0].mxu0
        %v731 = vadd.f32 %v504, %v730
        %v732 = vpop.f32.mrb[0].mxu0
        %v733 = vadd.f32 %v509, %v732
        %v734 = vpop.f32.mrb[0].mxu0
        %v735 = vadd.f32 %v509, %v734
        %736 = vmatprep.mubr.bf16.mxu0 0
        %737 = vmatmul.mubr.bf16.gmra.mrb[0].mxu0 %v584
        %v738 = vpop.f32.mrb[0].mxu0
        %v739 = vadd.f32 %v514, %v738
        %v740 = vpop.f32.mrb[0].mxu0
        %v741 = vadd.f32 %v514, %v740
        %v742 = vpop.f32.mrb[0].mxu0
        %v743 = vadd.f32 %v519, %v742
        %v744 = vpop.f32.mrb[0].mxu0
        %v745 = vadd.f32 %v519, %v744
        %746 = vdwg.mxu0
        %v747 = vpack.c.bf16 %v673, %v669
        %v748 = vpack.c.bf16 %v675, %v671
        %v749 = vpack.c.bf16 %v683, %v679
        %v750 = vpack.c.bf16 %v685, %v681
        %v751 = vpack.c.bf16 %v693, %v689
        %v752 = vpack.c.bf16 %v695, %v691
        %v753 = vpack.c.bf16 %v703, %v699
        %v754 = vpack.c.bf16 %v705, %v701
        %v755 = vpack.c.bf16 %v713, %v709
        %v756 = vpack.c.bf16 %v715, %v711
        %v757 = vpack.c.bf16 %v723, %v719
        %v758 = vpack.c.bf16 %v725, %v721
        %v759 = vpack.c.bf16 %v733, %v729
        %v760 = vpack.c.bf16 %v735, %v731
        %v761 = vpack.c.bf16 %v743, %v739
        %v762 = vpack.c.bf16 %v745, %v741
        %v763 = vtanh.bf16.pop %v747
        %v764 = vtanh.bf16.pop %v748
        %v765 = vtanh.bf16.pop %v749
        %v766 = vtanh.bf16.pop %v750
        %v767 = vtanh.bf16.pop %v751
        %v768 = vtanh.bf16.pop %v752
        %v769 = vtanh.bf16.pop %v753
        %v770 = vtanh.bf16.pop %v754
        %v771 = vtanh.bf16.pop %v755
        %v772 = vtanh.bf16.pop %v756
        %v773 = vtanh.bf16.pop %v757
        %v774 = vtanh.bf16.pop %v758
        %v775 = vtanh.bf16.pop %v759
        %v776 = vtanh.bf16.pop %v760
        %v777 = vtanh.bf16.pop %v761
        %v778 = vtanh.bf16.pop %v762
        %v779 = vld [vmem:[%s3] sm:$0xf]
        %v780 = vld [vmem:[%s3 + $0x4] sm:$0xf]
        %v781 = vld [vmem:[%s3 + $0x8] sm:$0xf]
        %v782 = vld [vmem:[%s3 + $0xc] sm:$0xf]
        %v783 = vld [vmem:[%s3 + $0x10] sm:$0xf]
        %v784 = vld [vmem:[%s3 + $0x14] sm:$0xf]
        %v785 = vld [vmem:[%s3 + $0x18] sm:$0xf]
        %v786 = vld [vmem:[%s3 + $0x1c] sm:$0xf]
        %v787 = vld [vmem:[%s3 + $0x20] sm:$0xf]
        %v788 = vld [vmem:[%s3 + $0x24] sm:$0xf]
        %v789 = vld [vmem:[%s3 + $0x28] sm:$0xf]
        %v790 = vld [vmem:[%s3 + $0x2c] sm:$0xf]
        %v791 = vld [vmem:[%s3 + $0x30] sm:$0xf]
        %v792 = vld [vmem:[%s3 + $0x34] sm:$0xf]
        %v793 = vld [vmem:[%s3 + $0x38] sm:$0xf]
        %v794 = vld [vmem:[%s3 + $0x3c] sm:$0xf]
        %v795 = vld [vmem:[%s3 + $0x40] sm:$0xf]
        %v796 = vld [vmem:[%s3 + $0x44] sm:$0xf]
        %v797 = vld [vmem:[%s3 + $0x48] sm:$0xf]
        %v798 = vld [vmem:[%s3 + $0x4c] sm:$0xf]
        %v799 = vld [vmem:[%s4] sm:$0xff]
        %v800 = vld [vmem:[%s4 + $0x8] sm:$0xff]
        %v801 = vld [vmem:[%s4 + $0x10] sm:$0xff]
        %v802 = vld [vmem:[%s4 + $0x18] sm:$0xff]
        %v803 = vld [vmem:[%s4 + $0x20] sm:$0xff]
        %v804 = vld [vmem:[%s4 + $0x28] sm:$0xff]
        %v805 = vld [vmem:[%s4 + $0x30] sm:$0xff]
        %v806 = vld [vmem:[%s4 + $0x38] sm:$0xff]
        %v807 = vld [vmem:[%s4 + $0x40] sm:$0xff]
        %v808 = vld [vmem:[%s4 + $0x48] sm:$0xff]
        %v809 = vld [vmem:[%s4 + $0x50] sm:$0xff]
        %v810 = vld [vmem:[%s4 + $0x58] sm:$0xff]
        %v811 = vld [vmem:[%s4 + $0x60] sm:$0xff]
        %v812 = vld [vmem:[%s4 + $0x68] sm:$0xff]
        %v813 = vld [vmem:[%s4 + $0x70] sm:$0xff]
        %v814 = vld [vmem:[%s4 + $0x78] sm:$0xff]
        %v815 = vld [vmem:[%s4 + $0x80] sm:$0xff]
        %v816 = vld [vmem:[%s4 + $0x88] sm:$0xff]
        %v817 = vld [vmem:[%s4 + $0x90] sm:$0xff]
        %v818 = vld [vmem:[%s4 + $0x98] sm:$0xff]
        %820 = vset.pattern.permute.xlu0 0
        %821 = vperm.xlu0 %820, %v799
        %v822 = vpop.permute.xlu0 %821
        %825 = vset.pattern.permute.xlu0 0
        %826 = vperm.xlu0 %825, %v800
        %v827 = vpop.permute.xlu0 %826
        %830 = vset.pattern.permute.xlu0 0
        %831 = vperm.xlu0 %830, %v801
        %v832 = vpop.permute.xlu0 %831
        %835 = vset.pattern.permute.xlu0 0
        %836 = vperm.xlu0 %835, %v802
        %v837 = vpop.permute.xlu0 %836
        %840 = vset.pattern.permute.xlu0 0
        %841 = vperm.xlu0 %840, %v803
        %v842 = vpop.permute.xlu0 %841
        %845 = vset.pattern.permute.xlu0 0
        %846 = vperm.xlu0 %845, %v804
        %v847 = vpop.permute.xlu0 %846
        %850 = vset.pattern.permute.xlu0 0
        %851 = vperm.xlu0 %850, %v805
        %v852 = vpop.permute.xlu0 %851
        %855 = vset.pattern.permute.xlu0 0
        %856 = vperm.xlu0 %855, %v806
        %v857 = vpop.permute.xlu0 %856
        %860 = vset.pattern.permute.xlu0 0
        %861 = vperm.xlu0 %860, %v807
        %v862 = vpop.permute.xlu0 %861
        %865 = vset.pattern.permute.xlu0 0
        %866 = vperm.xlu0 %865, %v808
        %v867 = vpop.permute.xlu0 %866
        %870 = vset.pattern.permute.xlu0 0
        %871 = vperm.xlu0 %870, %v809
        %v872 = vpop.permute.xlu0 %871
        %875 = vset.pattern.permute.xlu0 0
        %876 = vperm.xlu0 %875, %v810
        %v877 = vpop.permute.xlu0 %876
        %880 = vset.pattern.permute.xlu0 0
        %881 = vperm.xlu0 %880, %v811
        %v882 = vpop.permute.xlu0 %881
        %885 = vset.pattern.permute.xlu0 0
        %886 = vperm.xlu0 %885, %v812
        %v887 = vpop.permute.xlu0 %886
        %890 = vset.pattern.permute.xlu0 0
        %891 = vperm.xlu0 %890, %v813
        %v892 = vpop.permute.xlu0 %891
        %895 = vset.pattern.permute.xlu0 0
        %896 = vperm.xlu0 %895, %v814
        %v897 = vpop.permute.xlu0 %896
        %900 = vset.pattern.permute.xlu0 0
        %901 = vperm.xlu0 %900, %v815
        %v902 = vpop.permute.xlu0 %901
        %905 = vset.pattern.permute.xlu0 0
        %906 = vperm.xlu0 %905, %v816
        %v907 = vpop.permute.xlu0 %906
        %910 = vset.pattern.permute.xlu0 0
        %911 = vperm.xlu0 %910, %v817
        %v912 = vpop.permute.xlu0 %911
        %915 = vset.pattern.permute.xlu0 0
        %916 = vperm.xlu0 %915, %v818
        %v917 = vpop.permute.xlu0 %916
        %v939 = vunpack.c.l.b16 %v779
        %v940 = vunpack.c.l.b16 %v780
        %v941 = vunpack.c.l.b16 %v781
        %v942 = vunpack.c.l.b16 %v782
        %v943 = vunpack.c.l.b16 %v783
        %v944 = vunpack.c.l.b16 %v784
        %v945 = vunpack.c.l.b16 %v785
        %v946 = vunpack.c.l.b16 %v786
        %v947 = vunpack.c.l.b16 %v787
        %v948 = vunpack.c.l.b16 %v788
        %v949 = vunpack.c.l.b16 %v789
        %v950 = vunpack.c.l.b16 %v790
        %v951 = vunpack.c.l.b16 %v791
        %v952 = vunpack.c.l.b16 %v792
        %v953 = vunpack.c.l.b16 %v793
        %v954 = vunpack.c.l.b16 %v794
        %v955 = vunpack.c.l.b16 %v795
        %v956 = vunpack.c.l.b16 %v796
        %v957 = vunpack.c.l.b16 %v797
        %v958 = vunpack.c.l.b16 %v798
        %v959 = vpack.c.b16 %v940, %v939
        %v960 = vpack.c.b16 %v942, %v941
        %v961 = vpack.c.b16 %v944, %v943
        %v962 = vpack.c.b16 %v946, %v945
        %v963 = vpack.c.b16 %v948, %v947
        %v964 = vpack.c.b16 %v950, %v949
        %v965 = vpack.c.b16 %v952, %v951
        %v966 = vpack.c.b16 %v954, %v953
        %v967 = vpack.c.b16 %v956, %v955
        %v968 = vpack.c.b16 %v958, %v957
        %979 = vmatprep.subr.bf16.mxu0 %v764
        %980 = vmatpush1.bf16.msra.mxu0 %v763
        %981 = vmatprep.subr.bf16.mxu0 %v766
        %982 = vmatpush1.bf16.msra.mxu0 %v765
        %983 = vmatprep.subr.bf16.mxu0 %v768
        %984 = vmatpush1.bf16.msra.mxu0 %v767
        %985 = vmatprep.subr.bf16.mxu0 %v770
        %986 = vmatpush1.bf16.msra.mxu0 %v769
        %987 = vmatprep.subr.bf16.mxu0 %v772
        %988 = vmatpush1.bf16.msra.mxu0 %v771
        %989 = vmatprep.subr.bf16.mxu0 %v774
        %990 = vmatpush1.bf16.msra.mxu0 %v773
        %991 = vmatprep.subr.bf16.mxu0 %v776
        %992 = vmatpush1.bf16.msra.mxu0 %v775
        %993 = vmatprep.subr.bf16.mxu0 %v778
        %994 = vmatpush1.bf16.msra.mxu0 %v777
        %995 = vmatprep.subr.bf16.mxu0 0
        %996 = vmatpush1.bf16.msra.mxu0 0
        %997 = vmatprep.subr.bf16.mxu0 0
        %998 = vmatpush1.bf16.msra.mxu0 0
        %999 = vmatprep.subr.bf16.mxu0 0
        %1000 = vmatpush1.bf16.msra.mxu0 0
        %1001 = vmatprep.subr.bf16.mxu0 0
        %1002 = vmatpush1.bf16.msra.mxu0 0
        %1003 = vmatprep.subr.bf16.mxu0 0
        %1004 = vmatpush1.bf16.msra.mxu0 0
        %1005 = vmatprep.subr.bf16.mxu0 0
        %1006 = vmatpush1.bf16.msra.mxu0 0
        %1007 = vmatprep.subr.bf16.mxu0 0
        %1008 = vmatpush1.bf16.msra.mxu0 0
        %1009 = vmatprep.subr.bf16.mxu0 0
        %1010 = vmatpush1.bf16.msra.mxu0 0
        %1011 = vmatprep.mubr.bf16.mxu0 0
        %1012 = vmatmul.mubr.bf16.gmra.mrb[0].mxu0 %v959
        %v1013 = vpop.f32.mrb[0].mxu0
        %v1014 = vadd.f32 %v822, %v1013
        %v1015 = vpop.f32.mrb[0].mxu0
        %v1016 = vadd.f32 %v822, %v1015
        %v1017 = vpop.f32.mrb[0].mxu0
        %v1018 = vadd.f32 %v827, %v1017
        %v1019 = vpop.f32.mrb[0].mxu0
        %v1020 = vadd.f32 %v827, %v1019
        %1021 = vmatprep.mubr.bf16.mxu0 0
        %1022 = vmatmul.mubr.bf16.gmra.mrb[0].mxu0 %v960
        %v1023 = vpop.f32.mrb[0].mxu0
        %v1024 = vadd.f32 %v832, %v1023
        %v1025 = vpop.f32.mrb[0].mxu0
        %v1026 = vadd.f32 %v832, %v1025
        %v1027 = vpop.f32.mrb[0].mxu0
        %v1028 = vadd.f32 %v837, %v1027
        %v1029 = vpop.f32.mrb[0].mxu0
        %v1030 = vadd.f32 %v837, %v1029
        %1031 = vmatprep.mubr.bf16.mxu0 0
        %1032 = vmatmul.mubr.bf16.gmra.mrb[0].mxu0 %v961
        %v1033 = vpop.f32.mrb[0].mxu0
        %v1034 = vadd.f32 %v842, %v1033
        %v1035 = vpop.f32.mrb[0].mxu0
        %v1036 = vadd.f32 %v842, %v1035
        %v1037 = vpop.f32.mrb[0].mxu0
        %v1038 = vadd.f32 %v847, %v1037
        %v1039 = vpop.f32.mrb[0].mxu0
        %v1040 = vadd.f32 %v847, %v1039
        %1041 = vmatprep.mubr.bf16.mxu0 0
        %1042 = vmatmul.mubr.bf16.gmra.mrb[0].mxu0 %v962
        %v1043 = vpop.f32.mrb[0].mxu0
        %v1044 = vadd.f32 %v852, %v1043
        %v1045 = vpop.f32.mrb[0].mxu0
        %v1046 = vadd.f32 %v852, %v1045
        %v1047 = vpop.f32.mrb[0].mxu0
        %v1048 = vadd.f32 %v857, %v1047
        %v1049 = vpop.f32.mrb[0].mxu0
        %v1050 = vadd.f32 %v857, %v1049
        %1051 = vmatprep.mubr.bf16.mxu0 0
        %1052 = vmatmul.mubr.bf16.gmra.mrb[0].mxu0 %v963
        %v1053 = vpop.f32.mrb[0].mxu0
        %v1054 = vadd.f32 %v862, %v1053
        %v1055 = vpop.f32.mrb[0].mxu0
        %v1056 = vadd.f32 %v862, %v1055
        %v1057 = vpop.f32.mrb[0].mxu0
        %v1058 = vadd.f32 %v867, %v1057
        %v1059 = vpop.f32.mrb[0].mxu0
        %v1060 = vadd.f32 %v867, %v1059
        %1061 = vmatprep.mubr.bf16.mxu0 0
        %1062 = vmatmul.mubr.bf16.gmra.mrb[0].mxu0 %v964
        %v1063 = vpop.f32.mrb[0].mxu0
        %v1064 = vadd.f32 %v872, %v1063
        %v1065 = vpop.f32.mrb[0].mxu0
        %v1066 = vadd.f32 %v872, %v1065
        %v1067 = vpop.f32.mrb[0].mxu0
        %v1068 = vadd.f32 %v877, %v1067
        %v1069 = vpop.f32.mrb[0].mxu0
        %v1070 = vadd.f32 %v877, %v1069
        %1071 = vmatprep.mubr.bf16.mxu0 0
        %1072 = vmatmul.mubr.bf16.gmra.mrb[0].mxu0 %v965
        %v1073 = vpop.f32.mrb[0].mxu0
        %v1074 = vadd.f32 %v882, %v1073
        %v1075 = vpop.f32.mrb[0].mxu0
        %v1076 = vadd.f32 %v882, %v1075
        %v1077 = vpop.f32.mrb[0].mxu0
        %v1078 = vadd.f32 %v887, %v1077
        %v1079 = vpop.f32.mrb[0].mxu0
        %v1080 = vadd.f32 %v887, %v1079
        %1081 = vmatprep.mubr.bf16.mxu0 0
        %1082 = vmatmul.mubr.bf16.gmra.mrb[0].mxu0 %v966
        %v1083 = vpop.f32.mrb[0].mxu0
        %v1084 = vadd.f32 %v892, %v1083
        %v1085 = vpop.f32.mrb[0].mxu0
        %v1086 = vadd.f32 %v892, %v1085
        %v1087 = vpop.f32.mrb[0].mxu0
        %v1088 = vadd.f32 %v897, %v1087
        %v1089 = vpop.f32.mrb[0].mxu0
        %v1090 = vadd.f32 %v897, %v1089
        %1091 = vmatprep.mubr.bf16.mxu0 0
        %1092 = vmatmul.mubr.bf16.gmra.mrb[0].mxu0 %v967
        %v1093 = vpop.f32.mrb[0].mxu0
        %v1094 = vadd.f32 %v902, %v1093
        %v1095 = vpop.f32.mrb[0].mxu0
        %v1096 = vadd.f32 %v902, %v1095
        %v1097 = vpop.f32.mrb[0].mxu0
        %v1098 = vadd.f32 %v907, %v1097
        %v1099 = vpop.f32.mrb[0].mxu0
        %v1100 = vadd.f32 %v907, %v1099
        %1101 = vmatprep.mubr.bf16.mxu0 0
        %1102 = vmatmul.mubr.bf16.gmra.mrb[0].mxu0 %v968
        %v1103 = vpop.f32.mrb[0].mxu0
        %v1104 = vadd.f32 %v912, %v1103
        %v1105 = vpop.f32.mrb[0].mxu0
        %v1106 = vadd.f32 %v912, %v1105
        %v1107 = vpop.f32.mrb[0].mxu0
        %v1108 = vadd.f32 %v917, %v1107
        %v1109 = vpop.f32.mrb[0].mxu0
        %v1110 = vadd.f32 %v917, %v1109
        %1111 = vdwg.mxu0
        %v1112 = vpack.c.bf16 %v1018, %v1014
        %v1113 = vpack.c.bf16 %v1020, %v1016
        %v1114 = vpack.c.bf16 %v1028, %v1024
        %v1115 = vpack.c.bf16 %v1030, %v1026
        %v1116 = vpack.c.bf16 %v1038, %v1034
        %v1117 = vpack.c.bf16 %v1040, %v1036
        %v1118 = vpack.c.bf16 %v1048, %v1044
        %v1119 = vpack.c.bf16 %v1050, %v1046
        %v1120 = vpack.c.bf16 %v1058, %v1054
        %v1121 = vpack.c.bf16 %v1060, %v1056
        %v1122 = vpack.c.bf16 %v1068, %v1064
        %v1123 = vpack.c.bf16 %v1070, %v1066
        %v1124 = vpack.c.bf16 %v1078, %v1074
        %v1125 = vpack.c.bf16 %v1080, %v1076
        %v1126 = vpack.c.bf16 %v1088, %v1084
        %v1127 = vpack.c.bf16 %v1090, %v1086
        %v1128 = vpack.c.bf16 %v1098, %v1094
        %v1129 = vpack.c.bf16 %v1100, %v1096
        %v1130 = vpack.c.bf16 %v1108, %v1104
        %v1131 = vpack.c.bf16 %v1110, %v1106
        %v1132 = vmax.bf16 %v1112, 0
        %v1133 = vmax.bf16 %v1113, 0
        %v1134 = vmax.bf16 %v1114, 0
        %v1135 = vmax.bf16 %v1115, 0
        %v1136 = vmax.bf16 %v1116, 0
        %v1137 = vmax.bf16 %v1117, 0
        %v1138 = vmax.bf16 %v1118, 0
        %v1139 = vmax.bf16 %v1119, 0
        %v1140 = vmax.bf16 %v1120, 0
        %v1141 = vmax.bf16 %v1121, 0
        %v1142 = vmax.bf16 %v1122, 0
        %v1143 = vmax.bf16 %v1123, 0
        %v1144 = vmax.bf16 %v1124, 0
        %v1145 = vmax.bf16 %v1125, 0
        %v1146 = vmax.bf16 %v1126, 0
        %v1147 = vmax.bf16 %v1127, 0
        %v1148 = vmax.bf16 %v1128, 0
        %v1149 = vmax.bf16 %v1129, 0
        %v1150 = vmax.bf16 %v1130, 0
        %v1151 = vmax.bf16 %v1131, 0
        %v1152 = vld [vmem:[%s5] sm:$0xff]
        %v1153 = vld [vmem:[%s5 + $0x8] sm:$0xff]
        %v1154 = vld [vmem:[%s5 + $0x10] sm:$0xff]
        %v1155 = vld [vmem:[%s5 + $0x18] sm:$0xff]
        %v1156 = vld [vmem:[%s5 + $0x20] sm:$0xff]
        %v1157 = vld [vmem:[%s5 + $0x28] sm:$0xff]
        %v1158 = vld [vmem:[%s5 + $0x30] sm:$0xff]
        %v1159 = vld [vmem:[%s5 + $0x38] sm:$0xff]
        %v1160 = vld [vmem:[%s6] sm:$0xff]
        %v1161 = vld [vmem:[%s6 + $0x8] sm:$0xff]
        %v1162 = vld [vmem:[%s6 + $0x10] sm:$0xff]
        %v1163 = vld [vmem:[%s6 + $0x18] sm:$0xff]
        %v1164 = vld [vmem:[%s6 + $0x20] sm:$0xff]
        %v1165 = vld [vmem:[%s6 + $0x28] sm:$0xff]
        %v1166 = vld [vmem:[%s6 + $0x30] sm:$0xff]
        %v1167 = vld [vmem:[%s6 + $0x38] sm:$0xff]
        %1169 = vset.pattern.permute.xlu0 0
        %1170 = vperm.xlu0 %1169, %v1160
        %v1171 = vpop.permute.xlu0 %1170
        %1174 = vset.pattern.permute.xlu0 0
        %1175 = vperm.xlu0 %1174, %v1161
        %v1176 = vpop.permute.xlu0 %1175
        %1179 = vset.pattern.permute.xlu0 0
        %1180 = vperm.xlu0 %1179, %v1162
        %v1181 = vpop.permute.xlu0 %1180
        %1184 = vset.pattern.permute.xlu0 0
        %1185 = vperm.xlu0 %1184, %v1163
        %v1186 = vpop.permute.xlu0 %1185
        %1189 = vset.pattern.permute.xlu0 0
        %1190 = vperm.xlu0 %1189, %v1164
        %v1191 = vpop.permute.xlu0 %1190
        %1194 = vset.pattern.permute.xlu0 0
        %1195 = vperm.xlu0 %1194, %v1165
        %v1196 = vpop.permute.xlu0 %1195
        %1199 = vset.pattern.permute.xlu0 0
        %1200 = vperm.xlu0 %1199, %v1166
        %v1201 = vpop.permute.xlu0 %1200
        %1204 = vset.pattern.permute.xlu0 0
        %1205 = vperm.xlu0 %1204, %v1167
        %v1206 = vpop.permute.xlu0 %1205
        %v1216 = vunpack.c.l.b16 %v1152
        %v1217 = vunpack.c.h.b16 %v1152
        %v1218 = vunpack.c.l.b16 %v1153
        %v1219 = vunpack.c.h.b16 %v1153
        %v1220 = vunpack.c.l.b16 %v1154
        %v1221 = vunpack.c.h.b16 %v1154
        %v1222 = vunpack.c.l.b16 %v1155
        %v1223 = vunpack.c.h.b16 %v1155
        %v1224 = vunpack.c.l.b16 %v1156
        %v1225 = vunpack.c.h.b16 %v1156
        %v1226 = vunpack.c.l.b16 %v1157
        %v1227 = vunpack.c.h.b16 %v1157
        %v1228 = vunpack.c.l.b16 %v1158
        %v1229 = vunpack.c.h.b16 %v1158
        %v1230 = vunpack.c.l.b16 %v1159
        %v1231 = vunpack.c.h.b16 %v1159
        %v1232 = vpack.c.b16 %v1218, %v1216
        %v1233 = vpack.c.b16 %v1219, %v1217
        %v1234 = vpack.c.b16 %v1222, %v1220
        %v1235 = vpack.c.b16 %v1223, %v1221
        %v1236 = vpack.c.b16 %v1226, %v1224
        %v1237 = vpack.c.b16 %v1227, %v1225
        %v1238 = vpack.c.b16 %v1230, %v1228
        %v1239 = vpack.c.b16 %v1231, %v1229
        %v1245 = vsel %vm561, %v1233, 0
        %v1248 = vsel %vm561, %v1235, 0
        %v1251 = vsel %vm561, %v1237, 0
        %v1254 = vsel %vm561, %v1239, 0
        %1256 = vmatprep.subr.bf16.mxu0 %v1133
        %1257 = vmatpush1.bf16.msra.mxu0 %v1132
        %1258 = vmatprep.subr.bf16.mxu0 %v1135
        %1259 = vmatpush1.bf16.msra.mxu0 %v1134
        %1260 = vmatprep.subr.bf16.mxu0 %v1137
        %1261 = vmatpush1.bf16.msra.mxu0 %v1136
        %1262 = vmatprep.subr.bf16.mxu0 %v1139
        %1263 = vmatpush1.bf16.msra.mxu0 %v1138
        %1264 = vmatprep.subr.bf16.mxu0 %v1141
        %1265 = vmatpush1.bf16.msra.mxu0 %v1140
        %1266 = vmatprep.subr.bf16.mxu0 %v1143
        %1267 = vmatpush1.bf16.msra.mxu0 %v1142
        %1268 = vmatprep.subr.bf16.mxu0 %v1145
        %1269 = vmatpush1.bf16.msra.mxu0 %v1144
        %1270 = vmatprep.subr.bf16.mxu0 %v1147
        %1271 = vmatpush1.bf16.msra.mxu0 %v1146
        %1272 = vmatprep.subr.bf16.mxu0 %v1149
        %1273 = vmatpush1.bf16.msra.mxu0 %v1148
        %1274 = vmatprep.subr.bf16.mxu0 %v1151
        %1275 = vmatpush1.bf16.msra.mxu0 %v1150
        %1276 = vmatprep.subr.bf16.mxu0 0
        %1277 = vmatpush1.bf16.msra.mxu0 0
        %1278 = vmatprep.subr.bf16.mxu0 0
        %1279 = vmatpush1.bf16.msra.mxu0 0
        %1280 = vmatprep.subr.bf16.mxu0 0
        %1281 = vmatpush1.bf16.msra.mxu0 0
        %1282 = vmatprep.subr.bf16.mxu0 0
        %1283 = vmatpush1.bf16.msra.mxu0 0
        %1284 = vmatprep.subr.bf16.mxu0 0
        %1285 = vmatpush1.bf16.msra.mxu0 0
        %1286 = vmatprep.subr.bf16.mxu0 0
        %1287 = vmatpush1.bf16.msra.mxu0 0
        %1288 = vmatprep.mubr.bf16.mxu0 %v1245
        %1289 = vmatmul.mubr.bf16.gmra.mrb[0].mxu0 %v1232
        %v1290 = vpop.f32.mrb[0].mxu0
        %v1291 = vadd.f32 %v1171, %v1290
        %v1292 = vpop.f32.mrb[0].mxu0
        %v1293 = vadd.f32 %v1171, %v1292
        %v1294 = vpop.f32.mrb[0].mxu0
        %v1295 = vadd.f32 %v1176, %v1294
        %v1296 = vpop.f32.mrb[0].mxu0
        %v1297 = vadd.f32 %v1176, %v1296
        %1298 = vmatprep.mubr.bf16.mxu0 %v1248
        %1299 = vmatmul.mubr.bf16.gmra.mrb[0].mxu0 %v1234
        %v1300 = vpop.f32.mrb[0].mxu0
        %v1301 = vadd.f32 %v1181, %v1300
        %v1302 = vpop.f32.mrb[0].mxu0
        %v1303 = vadd.f32 %v1181, %v1302
        %v1304 = vpop.f32.mrb[0].mxu0
        %v1305 = vadd.f32 %v1186, %v1304
        %v1306 = vpop.f32.mrb[0].mxu0
        %v1307 = vadd.f32 %v1186, %v1306
        %1308 = vmatprep.mubr.bf16.mxu0 %v1251
        %1309 = vmatmul.mubr.bf16.gmra.mrb[0].mxu0 %v1236
        %v1310 = vpop.f32.mrb[0].mxu0
        %v1311 = vadd.f32 %v1191, %v1310
        %v1312 = vpop.f32.mrb[0].mxu0
        %v1313 = vadd.f32 %v1191, %v1312
        %v1314 = vpop.f32.mrb[0].mxu0
        %v1315 = vadd.f32 %v1196, %v1314
        %v1316 = vpop.f32.mrb[0].mxu0
        %v1317 = vadd.f32 %v1196, %v1316
        %1318 = vmatprep.mubr.bf16.mxu0 %v1254
        %1319 = vmatmul.mubr.bf16.gmra.mrb[0].mxu0 %v1238
        %v1320 = vpop.f32.mrb[0].mxu0
        %v1321 = vadd.f32 %v1201, %v1320
        %v1322 = vpop.f32.mrb[0].mxu0
        %v1323 = vadd.f32 %v1201, %v1322
        %v1324 = vpop.f32.mrb[0].mxu0
        %v1325 = vadd.f32 %v1206, %v1324
        %v1326 = vpop.f32.mrb[0].mxu0
        %v1327 = vadd.f32 %v1206, %v1326
        %1328 = vdwg.mxu0
        %v1329 = vpack.c.bf16 %v1295, %v1291
        %v1330 = vpack.c.bf16 %v1297, %v1293
        %v1331 = vpack.c.bf16 %v1305, %v1301
        %v1332 = vpack.c.bf16 %v1307, %v1303
        %v1333 = vpack.c.bf16 %v1315, %v1311
        %v1334 = vpack.c.bf16 %v1317, %v1313
        %v1335 = vpack.c.bf16 %v1325, %v1321
        %v1336 = vpack.c.bf16 %v1327, %v1323
        %v1337 = vmax.bf16 %v1329, 0
        %v1338 = vmax.bf16 %v1330, 0
        %v1339 = vmax.bf16 %v1331, 0
        %v1340 = vmax.bf16 %v1332, 0
        %v1341 = vmax.bf16 %v1333, 0
        %v1342 = vmax.bf16 %v1334, 0
        %v1343 = vmax.bf16 %v1335, 0
        %v1344 = vmax.bf16 %v1336, 0
        %v1345 = vld [vmem:[%s7] sm:$0x1]
        %v1346 = vld [vmem:[#allocation2] sm:$0x1]
        %1348 = vset.pattern.permute.xlu0 0
        %1349 = vperm.xlu0 %1348, %v1346
        %v1350 = vpop.permute.xlu0 %1349
        %v1352 = vlaneseq
        %v1353 = vshrl.u32 %v1352, 7
        %v1354 = vsub.s32 0, %v1353
        %v1355 = vrot.slane %v1350, %v1354
        %vm1356 = vcmask 523264
        %v1358 = vsel %vm1356, %v1345, 0
        %1360 = vmatprep.subr.bf16.mxu0 %v1338
        %1361 = vmatpush1.bf16.msra.mxu0 %v1337
        %1362 = vmatprep.subr.bf16.mxu0 %v1340
        %1363 = vmatpush1.bf16.msra.mxu0 %v1339
        %1364 = vmatprep.subr.bf16.mxu0 %v1342
        %1365 = vmatpush1.bf16.msra.mxu0 %v1341
        %1366 = vmatprep.subr.bf16.mxu0 %v1344
        %1367 = vmatpush1.bf16.msra.mxu0 %v1343
        %1368 = vmatprep.subr.bf16.mxu0 0
        %1369 = vmatpush1.bf16.msra.mxu0 0
        %1370 = vmatprep.subr.bf16.mxu0 0
        %1371 = vmatpush1.bf16.msra.mxu0 0
        %1372 = vmatprep.subr.bf16.mxu0 0
        %1373 = vmatpush1.bf16.msra.mxu0 0
        %1374 = vmatprep.subr.bf16.mxu0 0
        %1375 = vmatpush1.bf16.msra.mxu0 0
        %1376 = vmatprep.subr.bf16.mxu0 0
        %1377 = vmatpush1.bf16.msra.mxu0 0
        %1378 = vmatprep.subr.bf16.mxu0 0
        %1379 = vmatpush1.bf16.msra.mxu0 0
        %1380 = vmatprep.subr.bf16.mxu0 0
        %1381 = vmatpush1.bf16.msra.mxu0 0
        %1382 = vmatprep.subr.bf16.mxu0 0
        %1383 = vmatpush1.bf16.msra.mxu0 0
        %1384 = vmatprep.subr.bf16.mxu0 0
        %1385 = vmatpush1.bf16.msra.mxu0 0
        %1386 = vmatprep.subr.bf16.mxu0 0
        %1387 = vmatpush1.bf16.msra.mxu0 0
        %1388 = vmatprep.subr.bf16.mxu0 0
        %1389 = vmatpush1.bf16.msra.mxu0 0
        %1390 = vmatprep.subr.bf16.mxu0 0
        %1391 = vmatpush1.bf16.msra.mxu0 0
        %1392 = vmatprep.mubr.bf16.mxu0 0
        %1393 = vmatmul.mubr.bf16.gmra.mrb[0].mxu0 %v1358
        %v1394 = vpop.f32.mrb[0].mxu0
        %v1395 = vadd.f32 %v1355, %v1394
        %v1396 = vpop.f32.mrb[0].mxu0
        %v1397 = vadd.f32 %v1355, %v1396
        %v1398 = vpop.f32.mrb[0].mxu0
        %v1399 = vpop.f32.mrb[0].mxu0
        %1400 = vdwg.mxu0
        %v1401 = vxor.u32 %v1395, 2147483648
        %v1402 = vxor.u32 %v1397, 2147483648
        %v1403 = vmul.f32 %v1401, 1.442695
        %v1404 = vpow.pop %v1403
        %v1405 = vmul.f32 %v1402, 1.442695
        %v1406 = vpow.pop %v1405
        %v1407 = vadd.f32 %v1404, 1.0
        %v1408 = vadd.f32 %v1406, 1.0
        %v1409 = vrcp.pop %v1407
        %v1410 = vmul.f32 1.0, %v1409
        %v1411 = vrcp.pop %v1408
        %v1412 = vmul.f32 1.0, %v1411
        %v1415 = vcombine.low %v1410, %v1412
        %v1417 = vunpack.c.l.s4 1966171168
        %v1418 = vunpack.c.0.s8 %v1417
        %v1419 = vlaneseq
        %v1420 = vshrl.u32 %v1419, 7
        %v1421 = vsub.s32 %v1418, %v1420
        %v1422 = vrot.slane %v1415, %v1421
        %v1424 = vunpack.c.l.s4 1966171168
        %v1425 = vunpack.c.0.s8 %v1424
        %v1426 = vlaneseq
        %v1427 = vshrl.u32 %v1426, 7
        %v1428 = vsub.s32 %v1425, %v1427
        %v1429 = vrot.slane %v1422, %v1428
        %v1431 = vlaneseq
        %vm1432 = vcmp.ge.s32.totalorder %v1431, 0
        %vm1433 = vcmp.lt.s32.totalorder %v1431, 256
        %vm1434 = vmand %vm1432, %vm1433
        %1435 = vst.msk [vmem:[%s340] sm:$0x3] %vm1434, %v1429
        %s1436 = sand.u32 %s227, 1
        %s1437 = scalar_lea.sflag [#allocation4], %s1436
        %s1438 = sand.u32 %s227, 1
        %s1439 = smul.addr %s1438, 2
        %s1440 = scalar_lea.vmem [#allocation3], %s1439
        // Predicated region
        $region57: #{tpu_custom_call.1} parent=55 // pred_check
          %p1441 = pneg %p237
        $region58: #{tpu_custom_call.1} parent=55 // pred_check_branch
          %1443 = sbr.rel (%p1441) target = $region60
        $region59: #{tpu_custom_call.1} parent=55 // pred_region
          %s1444 = smul.u32 2, %s25
          %s1445 = ssub.s32 3, %s1444
          %p1446 = scmp.lt.s32.totalorder %s1445, 2
          %s1447 = scalar_select %p1446, %s1445, 2
          %s1448 = smul.u32 16, %s1447
          %s1450 = ssub.s32 32, %s1448
          %1451 = vsyncadd %s1437, %s1450
          %p1452 = scmp.ne.s32.totalorder 0, %s1448
          %s1453 = smul.addr %s1444, 16
          %s1454 = scalar_lea.hbm %s9, %s1453
          %s1455 = sshll.u32 %s1447, 4
          %s1456 = sshll.u32 %s1440, 4
          %s1457 = int_to_ptr.vmem [resolvable:$true] %s1456
          %1459 = dma.vmem_to_hbm [thread:$0]  (%p1452), %s1457, %s1455, %s1454, %s1437
        $region60: #{tpu_custom_call.1} parent=55 // pred_fallthru
          _
      $region56: #{tpu_custom_call.1} parent=5 // pred_fallthru
        _
      %p1460 = scmp.le.s32.totalorder 2, %s20
      // Predicated region
      $region61: #{tpu_custom_call.1} parent=5 // pred_check
        %p1461 = pneg %p1460
      $region62: #{tpu_custom_call.1} parent=5 // pred_check_branch
        %1463 = sbr.rel (%p1461) target = $region64
      $region63: #{tpu_custom_call.1} parent=5 // pred_region
        %s1464 = ssub.s32 %s20, 2
        // Predicated region
        $region65: #{tpu_custom_call.1} parent=63 // pred_check
          %p1465 = pneg %p243
        $region66: #{tpu_custom_call.1} parent=63 // pred_check_branch
          %1467 = sbr.rel (%p1465) target = $region68
        $region67: #{tpu_custom_call.1} parent=63 // pred_region
          %s1468 = sand.u32 %s228, 1
          %s1469 = scalar_lea.sflag [#allocation4], %s1468
          %s1470 = sand.u32 %s228, 1
          %s1471 = smul.addr %s1470, 2
          %s1472 = scalar_lea.vmem [#allocation3], %s1471
          %1473 = dma.done %s1469, 32
        $region68: #{tpu_custom_call.1} parent=63 // pred_fallthru
          _
      $region64: #{tpu_custom_call.1} parent=5 // pred_fallthru
        _
    $region6: #{tpu_custom_call.1} parent=1 // loop_footer
      %s24 = sadd.s32 1, %s20
    $region7: #{tpu_custom_call.1} parent=1 // loop_footer_branch
      %19 = sbr.rel target = $region3
    $region8: #{tpu_custom_call.1} parent=1 // loop_exit
      _
    %1474 = vsyncpa [#allocation4], 1
    %s1475 = scalar_lea.sflag [#allocation4], 1
    %1476 = vsyncpa %s1475, 1

</llo_original>
